<compile_context>
chip_gen: v5e
topology: v5e:2x2
jax: 0.10.0
libtpu: 0.0.40
codegen_flags: <defaults>
</compile_context>

<pallas_src>
import functools

import jax
import jax.numpy as jnp
from jax.experimental import pallas as pl
from jax.experimental.pallas import tpu as pltpu


def _round_up(x, m):
    return (x + m - 1) // m * m


def _vmem_budget_bytes():
    """Generation-aware VMEM budget (~80% of per-core capacity for headroom)."""
    cap = 64 << 20  # conservative fallback = v7x per-TensorCore VMEM
    try:
        info = pltpu.get_tpu_info()
        for name in ("vmem_capacity_bytes", "vmem_bytes", "vmem_size_bytes"):
            v = getattr(info, name, None)
            if v:
                cap = int(v)
                break
    except Exception:
        pass
    return cap * 13 // 16   # ~52 MiB on v7x, ~104 MiB on v5e/v6e


def _compiler_params(vmem_limit_bytes, **kwargs):
    return pltpu.CompilerParams(vmem_limit_bytes=int(vmem_limit_bytes), **kwargs)


# ---------------------------------------------------------------------------
# Kernel 1: Chebyshev basis  T_k(L) X  for k = 0..K-1, batch folded into lanes.
#   lap2_ref : (V, V) = 2*L (pre-cast)   x_ref : (V, TBF)   basis_ref : (K, V, TBF)
# ---------------------------------------------------------------------------
def make_cheb_basis_kernel(kernel_size: int):
    K = kernel_size

    def cheb_basis_kernel(lap2_ref, x_ref, basis_ref):
        lap2 = lap2_ref[...]                       # resident, already matmul dtype
        x0 = x_ref[...]                            # f32 carry; T_0(L) x = x
        basis_ref[0] = x0.astype(basis_ref.dtype)
        if K > 1:
            # T_1 = L x = 0.5 * (2L) x  (exact power-of-two rescale).
            x1 = 0.5 * jnp.dot(lap2, x0.astype(lap2.dtype),
                               preferred_element_type=jnp.float32)
            basis_ref[1] = x1.astype(basis_ref.dtype)
            for k in range(2, K):
                # T_k = 2 L T_{k-1} - T_{k-2}; the 2x is folded into lap2.
                x2 = jnp.dot(lap2, x1.astype(lap2.dtype),
                             preferred_element_type=jnp.float32) - x0
                basis_ref[k] = x2.astype(basis_ref.dtype)
                x0, x1 = x1, x2

    return cheb_basis_kernel


def cheb_basis(lap2, x_slab, kernel_size, out_dtype, vmem_budget):
    """lap2: [V,V] (=2L, matmul dtype), x_slab: [V,BFp] f32 -> basis [K,V,BFp]."""
    V, BFp = x_slab.shape
    K = kernel_size
    lap_bytes = jnp.dtype(lap2.dtype).itemsize
    out_bytes = jnp.dtype(out_dtype).itemsize

    # Largest lane tile (multiple of 128 dividing BFp) that fits the VMEM budget.
    tbf = 128
    lap_resident = 2 * V * V * lap_bytes                    # conservatively x2
    for cand in sorted({BFp, 2048, 1024, 512, 256, 128}, reverse=True):
        if cand > BFp or cand % 128 != 0 or BFp % cand != 0:
            continue
        need = (lap_resident
                + 2 * (V * cand * 4 + K * V * cand * out_bytes)   # x in + basis out
                + 3 * V * cand * 4)                               # f32 recursion carries
        if need <= vmem_budget:
            tbf = cand
            break

    grid = (BFp // tbf,)
    return pl.pallas_call(
        make_cheb_basis_kernel(K),
        out_shape=jax.ShapeDtypeStruct((K, V, BFp), out_dtype),
        grid=grid,
        in_specs=[
            # TODO(synk): when 2*V*V*lap_bytes approaches ~half the VMEM budget
            # (large V on v7x), stream the Laplacian in (TV, V) row tiles
            # (memory_space=pl.ANY + manual DMA) instead of one resident block.
            pl.BlockSpec((V, V), lambda j: (0, 0)),
            pl.BlockSpec((V, tbf), lambda j: (0, j)),
        ],
        out_specs=pl.BlockSpec((K, V, tbf), lambda j: (0, 0, j)),
        compiler_params=_compiler_params(vmem_budget,
                                         dimension_semantics=("parallel",)),
    )(lap2, x_slab)


# ---------------------------------------------------------------------------
# Kernel 2a: row-tiled conv matmul + per-tile per-channel sum / sum-of-squares.
#   z_ref : (TR, K*Fin)  w_ref : (K*Fin, Fp)  b_ref : (1, Fp)
#   y_ref : (TR, Fp)     stats_ref : (1, 2, Fp)   [row0 = sum, row1 = sum of squares]
# ---------------------------------------------------------------------------
def make_conv_stats_kernel(rows_true: int, tile_rows: int, rows_padded: int):
    masked = rows_padded != rows_true

    def conv_stats_kernel(z_ref, w_ref, b_ref, y_ref, stats_ref):
        y = jnp.dot(z_ref[...], w_ref[...],
                    preferred_element_type=jnp.float32) + b_ref[...]
        y_ref[...] = y
        if masked:
            # Exclude zero-padded rows from the batch statistics.
            row0 = pl.program_id(0) * tile_rows
            rid = jax.lax.broadcasted_iota(jnp.int32, y.shape, 0) + row0
            yv = jnp.where(rid < rows_true, y, 0.0)
        else:
            yv = y
        s = jnp.sum(yv, axis=0, keepdims=True)
        sq = jnp.sum(yv * yv, axis=0, keepdims=True)
        stats_ref[0] = jnp.concatenate([s, sq], axis=0)

    return conv_stats_kernel


def _pick_row_tile(rows, kfin, fp, z_bytes, budget):
    rows8 = _round_up(rows, 8)
    tr = 8
    for cand in (2048, 1024, 512, 256, 128, 64, 32, 16, 8):
        if cand > rows8:
            continue
        need = (2 * cand * (kfin * z_bytes + fp * 4)    # z in + y out (double-buffered)
                + 2 * kfin * fp * 4 + 2 * fp * 4        # resident weight + bias
                + 4 * cand * fp * 4)                    # in-kernel f32 intermediates
        if need <= budget:
            tr = cand
            break
    return max(tr, 8)


def conv_and_stats(z_p, w, bias, rows_true, tile_rows, vmem_budget):
    rows_p, kfin = z_p.shape
    fp = w.shape[1]
    num_tiles = rows_p // tile_rows
    return pl.pallas_call(
        make_conv_stats_kernel(rows_true, tile_rows, rows_p),
        out_shape=(jax.ShapeDtypeStruct((rows_p, fp), jnp.float32),
                   jax.ShapeDtypeStruct((num_tiles, 2, fp), jnp.float32)),
        grid=(num_tiles,),
        in_specs=[
            pl.BlockSpec((tile_rows, kfin), lambda i: (i, 0)),
            pl.BlockSpec((kfin, fp), lambda i: (0, 0)),
            pl.BlockSpec((1, fp), lambda i: (0, 0)),
        ],
        out_specs=(
            pl.BlockSpec((tile_rows, fp), lambda i: (i, 0)),
            pl.BlockSpec((1, 2, fp), lambda i: (i, 0, 0)),
        ),
        compiler_params=_compiler_params(vmem_budget,
                                         dimension_semantics=("parallel",)),
    )(z_p, w, bias)


# ---------------------------------------------------------------------------
# Kernel 2b: row-tiled BatchNorm apply (scale/shift) + ReLU, in place over y.
# ---------------------------------------------------------------------------
def bn_relu_kernel(y_ref, scale_ref, shift_ref, o_ref):
    o_ref[...] = jnp.maximum(y_ref[...] * scale_ref[...] + shift_ref[...],
                             0.0).astype(o_ref.dtype)


def bn_relu(y, scale, shift, tile_rows, vmem_budget):
    rows_p, fp = y.shape
    num_tiles = rows_p // tile_rows
    return pl.pallas_call(
        bn_relu_kernel,
        out_shape=jax.ShapeDtypeStruct((rows_p, fp), jnp.float32),
        grid=(num_tiles,),
        in_specs=[
            pl.BlockSpec((tile_rows, fp), lambda i: (i, 0)),
            pl.BlockSpec((1, fp), lambda i: (0, 0)),
            pl.BlockSpec((1, fp), lambda i: (0, 0)),
        ],
        out_specs=pl.BlockSpec((tile_rows, fp), lambda i: (i, 0)),
        input_output_aliases={0: 0},   # normalize y in place (no extra HBM buffer)
        compiler_params=_compiler_params(vmem_budget,
                                         dimension_semantics=("parallel",)),
    )(y, scale, shift)


# ---------------------------------------------------------------------------
# Module wrapper: SphericalChebConv + BatchNorm1d (training-mode stats) + ReLU
# ---------------------------------------------------------------------------
def spherical_cheb_bn_forward(x, lap, weight, bias, gamma, beta,
                              eps=1e-5, matmul_dtype=jnp.bfloat16):
    """x: [B,V,Fin], lap: [V,V], weight: [K,Fin,Fout], bias/gamma/beta: [1,Fout]."""
    B, V, Fin = x.shape
    K, _, Fout = weight.shape
    BF = B * Fin
    BFp = _round_up(BF, 128)      # lane-dense folded batch*Fin axis
    Fp = _round_up(Fout, 128)     # lane-dense channel axis for conv/BN output
    KFin = K * Fin
    rows = B * V

    budget = _vmem_budget_bytes()

    # Wrapper-side layout plumbing: [B,V,Fin] -> [V, B*Fin], 128-padded lanes.
    x_slab = jnp.transpose(x, (1, 0, 2)).reshape(V, BF).astype(jnp.float32)
    x_slab = jnp.pad(x_slab, ((0, 0), (0, BFp - BF)))
    # Pre-scaled (2L) and pre-cast Laplacian: no per-step V^2 cast/scale in-kernel,
    # half the resident VMEM / DMA bytes in bf16 mode.
    lap2 = (2.0 * lap).astype(matmul_dtype)

    basis = cheb_basis(lap2, x_slab, K, matmul_dtype, budget)       # [K, V, BFp]

    # basis -> z [B*V, K*Fin] so the K per-order weight matmuls fuse into ONE
    # contraction.  Done in matmul_dtype (bf16 by default) to halve the traffic of
    # this XLA transpose of the largest intermediate.
    # TODO(synk): when Fin >= 128 this transpose can be removed entirely by feeding
    # basis [K,V,BFp] to kernel 2a with lane-sliced index maps + a K accumulation axis.
    z = (basis[:, :, :BF]
         .reshape(K, V, B, Fin)
         .transpose(2, 1, 0, 3)
         .reshape(rows, KFin))

    tr = _pick_row_tile(rows, KFin, Fp, jnp.dtype(matmul_dtype).itemsize, budget)
    rows_p = _round_up(rows, tr)
    z_p = jnp.pad(z, ((0, rows_p - rows), (0, 0)))

    pad_c = ((0, 0), (0, Fp - Fout))
    w_flat = jnp.pad(weight.reshape(KFin, Fout), pad_c).astype(matmul_dtype)
    bias_p = jnp.pad(bias.astype(jnp.float32), pad_c)
    gamma_p = jnp.pad(gamma.astype(jnp.float32), pad_c)
    beta_p = jnp.pad(beta.astype(jnp.float32), pad_c)

    # Kernel 2a: row-tiled conv matmul + per-tile partial BN statistics.
    y, stats = conv_and_stats(z_p, w_flat, bias_p, rows, tr, budget)

    # Tiny cross-tile combine (num_tiles x Fp) + BN scale/shift, wrapper-side.
    inv_n = 1.0 / float(rows)
    mean = jnp.sum(stats[:, 0, :], axis=0) * inv_n
    var = jnp.maximum(jnp.sum(stats[:, 1, :], axis=0) * inv_n - mean * mean, 0.0)
    inv_std = jax.lax.rsqrt(var + eps)
    scale = (gamma_p[0] * inv_std)[None, :]
    shift = (beta_p[0] - mean * gamma_p[0] * inv_std)[None, :]
    # TODO(synk): PyTorch BatchNorm1d also updates running_mean/running_var buffers;
    # only the training-mode batch-statistics forward is reproduced.

    # Kernel 2b: row-tiled normalize + affine + ReLU (megacore-parallel, in place).
    out = bn_relu(y, scale, shift, tr, budget)                      # [rows_p, Fp]
    return out[:rows, :Fout].reshape(B, V, Fout)


# Pure-JAX reference for correctness checking.
def _reference(x, lap, weight, bias, gamma, beta, eps=1e-5):
    K = weight.shape[0]
    xs = [x, jnp.einsum("uv,bvc->buc", lap, x)] if K > 1 else [x]
    for _ in range(2, K):
        xs.append(2.0 * jnp.einsum("uv,bvc->buc", lap, xs[-1]) - xs[-2])
    y = sum(jnp.einsum("bvc,co->bvo", xs[k], weight[k]) for k in range(K)) + bias[0]
    mean = jnp.mean(y, axis=(0, 1), keepdims=True)
    var = jnp.mean((y - mean) ** 2, axis=(0, 1), keepdims=True)
    out = (y - mean) * jax.lax.rsqrt(var + eps) * gamma.reshape(1, 1, -1) + beta.reshape(1, 1, -1)
    return jnp.maximum(out, 0.0)


if __name__ == "__main__":
    # Small shapes consistent with the module's forward: [batch x vertices x channels].
    B, V, Fin, Fout, K = 2, 64, 4, 8, 3

    key = jax.random.PRNGKey(0)
    k_x, k_w = jax.random.split(key)

    # Input signal on the sphere (synthetic).
    x = jax.random.normal(k_x, (B, V, Fin), dtype=jnp.float32)

    # Deterministic synthetic (rescaled) graph Laplacian of a ring graph over V vertices.
    idx = jnp.arange(V)
    adj = (jnp.zeros((V, V), jnp.float32)
           .at[idx, (idx + 1) % V].set(1.0)
           .at[idx, (idx - 1) % V].set(1.0))
    deg = jnp.sum(adj, axis=1)
    lap_norm = jnp.eye(V, dtype=jnp.float32) - adj / jnp.sqrt(deg[:, None] * deg[None, :])
    lap = lap_norm - jnp.eye(V, dtype=jnp.float32)   # rescale assuming lmax = 2

    # Chebyshev conv parameters (deepsphere-style kaiming init, deterministic seed).
    std = (2.0 / (Fin * K)) ** 0.5
    weight = std * jax.random.normal(k_w, (K, Fin, Fout), dtype=jnp.float32)
    bias = jnp.full((1, Fout), 0.01, dtype=jnp.float32)

    # BatchNorm1d affine parameters (PyTorch defaults: gamma=1, beta=0).
    gamma = jnp.ones((1, Fout), dtype=jnp.float32)
    beta = jnp.zeros((1, Fout), dtype=jnp.float32)

    # f32 path: strict check against the pure-JAX reference.
    fwd_f32 = jax.jit(functools.partial(spherical_cheb_bn_forward,
                                        matmul_dtype=jnp.float32))
    out = jax.block_until_ready(fwd_f32(x, lap, weight, bias, gamma, beta))
    ref = _reference(x, lap, weight, bias, gamma, beta)
    assert out.shape == (B, V, Fout)
    assert jnp.allclose(out, ref, atol=1e-4, rtol=1e-4), "mismatch vs. pure-JAX reference"

    # Default bf16 path (MXU-native on v5e/v6e/v7x, f32 accumulation): run + sanity check.
    fwd_bf16 = jax.jit(spherical_cheb_bn_forward)
    out_bf16 = jax.block_until_ready(fwd_bf16(x, lap, weight, bias, gamma, beta))
    assert out_bf16.shape == (B, V, Fout)
    assert bool(jnp.all(jnp.isfinite(out_bf16)))

    print("KERNEL_OK")
</pallas_src>

<mosaic_0001>
module attributes {stable_mosaic.version = 11 : i64} {
  func.func @cheb_basis_kernel(%arg0: i32, %arg1: memref<64x64xf32, #tpu.memory_space<vmem>>, %arg2: memref<64x128xf32, #tpu.memory_space<vmem>>, %arg3: memref<3x64x128xf32, #tpu.memory_space<vmem>>) attributes {dimension_semantics = [#tpu.dimension_semantics<parallel>], iteration_bounds = array<i64: 1>, scalar_prefetch = 0 : i64, scratch_operands = 0 : i64, tpu.core_type = #tpu.core_type<tc>, window_params = [{pipeline_mode = #tpu.pipeline_mode<synchronous>, transform_indices = @transform_0, window_bounds = array<i64: 64, 64>}, {transform_indices = @transform_1, window_bounds = array<i64: 64, 128>}, {transform_indices = @transform_2, window_bounds = array<i64: 3, 64, 128>}]} {
    %c0 = arith.constant 0 : index
    %c0_0 = arith.constant 0 : index
    %0 = vector.load %arg1[%c0, %c0_0] : memref<64x64xf32, #tpu.memory_space<vmem>>, vector<64x64xf32>
    %c0_1 = arith.constant 0 : index
    %c0_2 = arith.constant 0 : index
    %1 = vector.load %arg2[%c0_1, %c0_2] : memref<64x128xf32, #tpu.memory_space<vmem>>, vector<64x128xf32>
    %c0_3 = arith.constant 0 : index
    %c0_4 = arith.constant 0 : index
    %c0_5 = arith.constant 0 : index
    %2 = vector.load %arg3[%c0_3, %c0_4, %c0_5] : memref<3x64x128xf32, #tpu.memory_space<vmem>>, vector<1x64x128xf32>
    %3 = vector.shape_cast %2 : vector<1x64x128xf32> to vector<64x128xf32>
    %4 = vector.shape_cast %1 : vector<64x128xf32> to vector<1x64x128xf32>
    tpu.vector_store %arg3[%c0_3, %c0_4, %c0_5], %4 {strides = array<i32>} : memref<3x64x128xf32, #tpu.memory_space<vmem>>, vector<1x64x128xf32>,
    %cst = arith.constant dense<0.000000e+00> : vector<64x128xf32>
    %5 = tpu.matmul %0, %1, %cst {dimension_numbers = #tpu.dot_dimension_numbers<[1], [0], [0], [1], [0, 0, 1, 1], [], []>} : vector<64x64xf32>, vector<64x128xf32>, vector<64x128xf32> -> vector<64x128xf32>
    %cst_6 = arith.constant 5.000000e-01 : f32
    %6 = vector.broadcast %cst_6 : f32 to vector<64x128xf32>
    %7 = arith.mulf %6, %5 : vector<64x128xf32>
    %c1 = arith.constant 1 : index
    %c0_7 = arith.constant 0 : index
    %c0_8 = arith.constant 0 : index
    %8 = vector.load %arg3[%c1, %c0_7, %c0_8] : memref<3x64x128xf32, #tpu.memory_space<vmem>>, vector<1x64x128xf32>
    %9 = vector.shape_cast %8 : vector<1x64x128xf32> to vector<64x128xf32>
    %10 = vector.shape_cast %7 : vector<64x128xf32> to vector<1x64x128xf32>
    tpu.vector_store %arg3[%c1, %c0_7, %c0_8], %10 {strides = array<i32>} : memref<3x64x128xf32, #tpu.memory_space<vmem>>, vector<1x64x128xf32>,
    %cst_9 = arith.constant dense<0.000000e+00> : vector<64x128xf32>
    %11 = tpu.matmul %0, %7, %cst_9 {dimension_numbers = #tpu.dot_dimension_numbers<[1], [0], [0], [1], [0, 0, 1, 1], [], []>} : vector<64x64xf32>, vector<64x128xf32>, vector<64x128xf32> -> vector<64x128xf32>
    %12 = arith.subf %11, %1 : vector<64x128xf32>
    %c2 = arith.constant 2 : index
    %c0_10 = arith.constant 0 : index
    %c0_11 = arith.constant 0 : index
    %13 = vector.load %arg3[%c2, %c0_10, %c0_11] : memref<3x64x128xf32, #tpu.memory_space<vmem>>, vector<1x64x128xf32>
    %14 = vector.shape_cast %13 : vector<1x64x128xf32> to vector<64x128xf32>
    %15 = vector.shape_cast %12 : vector<64x128xf32> to vector<1x64x128xf32>
    tpu.vector_store %arg3[%c2, %c0_10, %c0_11], %15 {strides = array<i32>} : memref<3x64x128xf32, #tpu.memory_space<vmem>>, vector<1x64x128xf32>,
    return
  }
  func.func @transform_0(%arg0: i32) -> (i32, i32) {
    %c0_i32 = arith.constant 0 : i32
    %c0_i32_0 = arith.constant 0 : i32
    %c0_i32_1 = arith.constant 0 : i32
    return %c0_i32, %c0_i32_0 : i32, i32
  }
  func.func @transform_1(%arg0: i32) -> (i32, i32) {
    %c0_i32 = arith.constant 0 : i32
    %c0_i32_0 = arith.constant 0 : i32
    return %c0_i32, %arg0 : i32, i32
  }
  func.func @transform_2(%arg0: i32) -> (i32, i32, i32) {
    %c0_i32 = arith.constant 0 : i32
    %c0_i32_0 = arith.constant 0 : i32
    %c0_i32_1 = arith.constant 0 : i32
    return %c0_i32, %c0_i32_0, %arg0 : i32, i32, i32
  }
}

module attributes {stable_mosaic.version = 11 : i64} {
  func.func @bn_relu_kernel(%arg0: i32, %arg1: memref<128x128xf32, #tpu.memory_space<vmem>>, %arg2: memref<1x128xf32, #tpu.memory_space<vmem>>, %arg3: memref<1x128xf32, #tpu.memory_space<vmem>>, %arg4: memref<128x128xf32, #tpu.memory_space<vmem>>) attributes {dimension_semantics = [#tpu.dimension_semantics<parallel>], iteration_bounds = array<i64: 1>, scalar_prefetch = 0 : i64, scratch_operands = 0 : i64, tpu.core_type = #tpu.core_type<tc>, window_params = [{transform_indices = @transform_0, window_bounds = array<i64: 128, 128>}, {pipeline_mode = #tpu.pipeline_mode<synchronous>, transform_indices = @transform_1, window_bounds = array<i64: 1, 128>}, {pipeline_mode = #tpu.pipeline_mode<synchronous>, transform_indices = @transform_2, window_bounds = array<i64: 1, 128>}, {transform_indices = @transform_3, window_bounds = array<i64: 128, 128>}]} {
    %c0 = arith.constant 0 : index
    %c0_0 = arith.constant 0 : index
    %0 = vector.load %arg1[%c0, %c0_0] : memref<128x128xf32, #tpu.memory_space<vmem>>, vector<128x128xf32>
    %c0_1 = arith.constant 0 : index
    %c0_2 = arith.constant 0 : index
    %1 = vector.load %arg2[%c0_1, %c0_2] : memref<1x128xf32, #tpu.memory_space<vmem>>, vector<1x128xf32>
    %2 = vector.broadcast %1 : vector<1x128xf32> to vector<128x128xf32>
    %3 = arith.mulf %0, %2 : vector<128x128xf32>
    %c0_3 = arith.constant 0 : index
    %c0_4 = arith.constant 0 : index
    %4 = vector.load %arg3[%c0_3, %c0_4] : memref<1x128xf32, #tpu.memory_space<vmem>>, vector<1x128xf32>
    %5 = vector.broadcast %4 : vector<1x128xf32> to vector<128x128xf32>
    %6 = arith.addf %3, %5 : vector<128x128xf32>
    %cst = arith.constant 0.000000e+00 : f32
    %7 = vector.broadcast %cst : f32 to vector<128x128xf32>
    %8 = arith.maximumf %6, %7 : vector<128x128xf32>
    %c0_5 = arith.constant 0 : index
    %c0_6 = arith.constant 0 : index
    %9 = vector.load %arg4[%c0_5, %c0_6] : memref<128x128xf32, #tpu.memory_space<vmem>>, vector<128x128xf32>
    tpu.vector_store %arg4[%c0_5, %c0_6], %8 {strides = array<i32>} : memref<128x128xf32, #tpu.memory_space<vmem>>, vector<128x128xf32>,
    return
  }
  func.func @transform_0(%arg0: i32) -> (i32, i32) {
    %c0_i32 = arith.constant 0 : i32
    %c0_i32_0 = arith.constant 0 : i32
    return %arg0, %c0_i32 : i32, i32
  }
  func.func @transform_1(%arg0: i32) -> (i32, i32) {
    %c0_i32 = arith.constant 0 : i32
    %c0_i32_0 = arith.constant 0 : i32
    %c0_i32_1 = arith.constant 0 : i32
    return %c0_i32, %c0_i32_0 : i32, i32
  }
  func.func @transform_2(%arg0: i32) -> (i32, i32) {
    %c0_i32 = arith.constant 0 : i32
    %c0_i32_0 = arith.constant 0 : i32
    %c0_i32_1 = arith.constant 0 : i32
    return %c0_i32, %c0_i32_0 : i32, i32
  }
  func.func @transform_3(%arg0: i32) -> (i32, i32) {
    %c0_i32 = arith.constant 0 : i32
    %c0_i32_0 = arith.constant 0 : i32
    return %arg0, %c0_i32 : i32, i32
  }
}

module attributes {stable_mosaic.version = 11 : i64} {
  func.func @conv_stats_kernel(%arg0: i32, %arg1: memref<128x12xf32, #tpu.memory_space<vmem>>, %arg2: memref<12x128xf32, #tpu.memory_space<vmem>>, %arg3: memref<1x128xf32, #tpu.memory_space<vmem>>, %arg4: memref<128x128xf32, #tpu.memory_space<vmem>>, %arg5: memref<1x2x128xf32, #tpu.memory_space<vmem>>) attributes {dimension_semantics = [#tpu.dimension_semantics<parallel>], iteration_bounds = array<i64: 1>, scalar_prefetch = 0 : i64, scratch_operands = 0 : i64, tpu.core_type = #tpu.core_type<tc>, window_params = [{transform_indices = @transform_0, window_bounds = array<i64: 128, 12>}, {pipeline_mode = #tpu.pipeline_mode<synchronous>, transform_indices = @transform_1, window_bounds = array<i64: 12, 128>}, {pipeline_mode = #tpu.pipeline_mode<synchronous>, transform_indices = @transform_2, window_bounds = array<i64: 1, 128>}, {transform_indices = @transform_3, window_bounds = array<i64: 128, 128>}, {transform_indices = @transform_4, window_bounds = array<i64: 1, 2, 128>}]} {
    %c0 = arith.constant 0 : index
    %c0_0 = arith.constant 0 : index
    %0 = vector.load %arg1[%c0, %c0_0] : memref<128x12xf32, #tpu.memory_space<vmem>>, vector<128x12xf32>
    %c0_1 = arith.constant 0 : index
    %c0_2 = arith.constant 0 : index
    %1 = vector.load %arg2[%c0_1, %c0_2] : memref<12x128xf32, #tpu.memory_space<vmem>>, vector<12x128xf32>
    %cst = arith.constant dense<0.000000e+00> : vector<128x128xf32>
    %2 = tpu.matmul %0, %1, %cst {dimension_numbers = #tpu.dot_dimension_numbers<[1], [0], [0], [1], [0, 0, 1, 1], [], []>} : vector<128x12xf32>, vector<12x128xf32>, vector<128x128xf32> -> vector<128x128xf32>
    %c0_3 = arith.constant 0 : index
    %c0_4 = arith.constant 0 : index
    %3 = vector.load %arg3[%c0_3, %c0_4] : memref<1x128xf32, #tpu.memory_space<vmem>>, vector<1x128xf32>
    %4 = vector.broadcast %3 : vector<1x128xf32> to vector<128x128xf32>
    %5 = arith.addf %2, %4 : vector<128x128xf32>
    %c0_5 = arith.constant 0 : index
    %c0_6 = arith.constant 0 : index
    %6 = vector.load %arg4[%c0_5, %c0_6] : memref<128x128xf32, #tpu.memory_space<vmem>>, vector<128x128xf32>
    tpu.vector_store %arg4[%c0_5, %c0_6], %5 {strides = array<i32>} : memref<128x128xf32, #tpu.memory_space<vmem>>, vector<128x128xf32>,
    %cst_7 = arith.constant dense<0.000000e+00> : vector<128xf32>
    %7 = vector.multi_reduction <add>, %5, %cst_7 [0] : vector<128x128xf32> to vector<128xf32>
    %8 = vector.shape_cast %7 : vector<128xf32> to vector<1x128xf32>
    %9 = arith.mulf %5, %5 : vector<128x128xf32>
    %cst_8 = arith.constant dense<0.000000e+00> : vector<128xf32>
    %10 = vector.multi_reduction <add>, %9, %cst_8 [0] : vector<128x128xf32> to vector<128xf32>
    %11 = vector.shape_cast %10 : vector<128xf32> to vector<1x128xf32>
    %12 = tpu.concatenate %8, %11 in 0 : vector<1x128xf32>, vector<1x128xf32> -> vector<2x128xf32>
    %c0_9 = arith.constant 0 : index
    %c0_10 = arith.constant 0 : index
    %c0_11 = arith.constant 0 : index
    %13 = vector.load %arg5[%c0_9, %c0_10, %c0_11] : memref<1x2x128xf32, #tpu.memory_space<vmem>>, vector<1x2x128xf32>
    %14 = vector.shape_cast %13 : vector<1x2x128xf32> to vector<2x128xf32>
    %15 = vector.shape_cast %12 : vector<2x128xf32> to vector<1x2x128xf32>
    tpu.vector_store %arg5[%c0_9, %c0_10, %c0_11], %15 {strides = array<i32>} : memref<1x2x128xf32, #tpu.memory_space<vmem>>, vector<1x2x128xf32>,
    return
  }
  func.func @transform_0(%arg0: i32) -> (i32, i32) {
    %c0_i32 = arith.constant 0 : i32
    %c0_i32_0 = arith.constant 0 : i32
    return %arg0, %c0_i32 : i32, i32
  }
  func.func @transform_1(%arg0: i32) -> (i32, i32) {
    %c0_i32 = arith.constant 0 : i32
    %c0_i32_0 = arith.constant 0 : i32
    %c0_i32_1 = arith.constant 0 : i32
    return %c0_i32, %c0_i32_0 : i32, i32
  }
  func.func @transform_2(%arg0: i32) -> (i32, i32) {
    %c0_i32 = arith.constant 0 : i32
    %c0_i32_0 = arith.constant 0 : i32
    %c0_i32_1 = arith.constant 0 : i32
    return %c0_i32, %c0_i32_0 : i32, i32
  }
  func.func @transform_3(%arg0: i32) -> (i32, i32) {
    %c0_i32 = arith.constant 0 : i32
    %c0_i32_0 = arith.constant 0 : i32
    return %arg0, %c0_i32 : i32, i32
  }
  func.func @transform_4(%arg0: i32) -> (i32, i32, i32) {
    %c0_i32 = arith.constant 0 : i32
    %c0_i32_0 = arith.constant 0 : i32
    %c0_i32_1 = arith.constant 0 : i32
    return %arg0, %c0_i32, %c0_i32_0 : i32, i32, i32
  }
}

</mosaic_0001>

<llo_original>
// kernel: spherical_cheb_bn_forward.3
$region0: #{spherical_cheb_bn_forward.3}
  #allocation0 [shape = 'u32[]', space=smem, size = 0x4, offset = 0x4, fixed_abs, tag = 'smem constant byte address 0x4 - core index']
  #allocation1 [shape = 'u32[72,128]{1,0:T(1,128)}', space=vmem, size = 0x9000, scoped, tag = 'internal scratch']
  %s0 = inlined_call_operand.vmem [shape: f32[64,64], index: 0, kind: input, shape index: {}]
  %s1 = inlined_call_operand.vmem [shape: f32[64,128], index: 1, kind: input, shape index: {}]
  %s2 = inlined_call_operand.vmem [shape: f32[3,64,128], index: 2, kind: output, shape index: {}]
  %s3 = sld [smem:[#allocation0]]
  $region18: #{spherical_cheb_bn_forward.3} parent=0
    _
  %s5 = ssub.s32 1, %s3
  %s6 = scalar_select 0, %s5, %s3
  // Predicated region
  $region2: #{spherical_cheb_bn_forward.3} parent=0 // pred_check
    _
  $region3: #{spherical_cheb_bn_forward.3} parent=0 // pred_check_branch
    %8 = sbr.rel (0) target = $region5
  $region4: #{spherical_cheb_bn_forward.3} parent=0 // pred_region
    _
  $region5: #{spherical_cheb_bn_forward.3} parent=0 // pred_fallthru
    _
  // Predicated region
  $region6: #{spherical_cheb_bn_forward.3} parent=0 // pred_check
    _
  $region7: #{spherical_cheb_bn_forward.3} parent=0 // pred_check_branch
    %10 = sbr.rel (0) target = $region9
  $region8: #{spherical_cheb_bn_forward.3} parent=0 // pred_region
    _
  $region9: #{spherical_cheb_bn_forward.3} parent=0 // pred_fallthru
    _
  %v11 = vld [vmem:[%s0] sm:$0xff]
  %v12 = vld [vmem:[%s0 + $0x8] sm:$0xff]
  %v13 = vld [vmem:[%s0 + $0x10] sm:$0xff]
  %v14 = vld [vmem:[%s0 + $0x18] sm:$0xff]
  %v15 = vld [vmem:[%s0 + $0x20] sm:$0xff]
  %v16 = vld [vmem:[%s0 + $0x28] sm:$0xff]
  %v17 = vld [vmem:[%s0 + $0x30] sm:$0xff]
  %v18 = vld [vmem:[%s0 + $0x38] sm:$0xff]
  %v19 = vld [vmem:[%s1] sm:$0xff]
  %v20 = vld [vmem:[%s1 + $0x8] sm:$0xff]
  %v21 = vld [vmem:[%s1 + $0x10] sm:$0xff]
  %v22 = vld [vmem:[%s1 + $0x18] sm:$0xff]
  %v23 = vld [vmem:[%s1 + $0x20] sm:$0xff]
  %v24 = vld [vmem:[%s1 + $0x28] sm:$0xff]
  %v25 = vld [vmem:[%s1 + $0x30] sm:$0xff]
  %v26 = vld [vmem:[%s1 + $0x38] sm:$0xff]
  %27 = vst [vmem:[%s2] sm:$0xff] %v19
  %28 = vst [vmem:[%s2 + $0x8] sm:$0xff] %v20
  %29 = vst [vmem:[%s2 + $0x10] sm:$0xff] %v21
  %30 = vst [vmem:[%s2 + $0x18] sm:$0xff] %v22
  %31 = vst [vmem:[%s2 + $0x20] sm:$0xff] %v23
  %32 = vst [vmem:[%s2 + $0x28] sm:$0xff] %v24
  %33 = vst [vmem:[%s2 + $0x30] sm:$0xff] %v25
  %34 = vst [vmem:[%s2 + $0x38] sm:$0xff] %v26
  %vm35 = vcmask 523264
  %v37 = vsel %vm35, %v11, 0
  %v40 = vsel %vm35, %v12, 0
  %v43 = vsel %vm35, %v13, 0
  %v46 = vsel %vm35, %v14, 0
  %v49 = vsel %vm35, %v15, 0
  %v52 = vsel %vm35, %v16, 0
  %v55 = vsel %vm35, %v17, 0
  %v58 = vsel %vm35, %v18, 0
  %60 = vmatpush.msra.mxu0 0.0
  %61 = vmatpush.msra.mxu0 0.0
  %62 = vmatpush.msra.mxu0 0.0
  %63 = vmatpush.msra.mxu0 0.0
  %64 = vmatpush.msra.mxu0 0.0
  %65 = vmatpush.msra.mxu0 0.0
  %66 = vmatpush.msra.mxu0 0.0
  %67 = vmatpush.msra.mxu0 0.0
  %68 = vmatpush.msra.mxu0 %v26
  %69 = vmatpush.msra.mxu0 %v25
  %70 = vmatpush.msra.mxu0 %v24
  %71 = vmatpush.msra.mxu0 %v23
  %72 = vmatpush.msra.mxu0 %v22
  %73 = vmatpush.msra.mxu0 %v21
  %74 = vmatpush.msra.mxu0 %v20
  %75 = vmatpush.msra.mxu0 %v19
  %76 = vmatmul.f32.gmra.mxu0 %v37
  %v77 = vpop.f32.mrf.mxu0
  %v78 = vadd.f32 0.0, %v77
  %79 = vmatmul.f32.gmra.mxu0 %v40
  %v80 = vpop.f32.mrf.mxu0
  %v81 = vadd.f32 0.0, %v80
  %82 = vmatmul.f32.gmra.mxu0 %v43
  %v83 = vpop.f32.mrf.mxu0
  %v84 = vadd.f32 0.0, %v83
  %85 = vmatmul.f32.gmra.mxu0 %v46
  %v86 = vpop.f32.mrf.mxu0
  %v87 = vadd.f32 0.0, %v86
  %88 = vmatmul.f32.gmra.mxu0 %v49
  %v89 = vpop.f32.mrf.mxu0
  %v90 = vadd.f32 0.0, %v89
  %91 = vmatmul.f32.gmra.mxu0 %v52
  %v92 = vpop.f32.mrf.mxu0
  %v93 = vadd.f32 0.0, %v92
  %94 = vmatmul.f32.gmra.mxu0 %v55
  %v95 = vpop.f32.mrf.mxu0
  %v96 = vadd.f32 0.0, %v95
  %97 = vmatmul.f32.gmra.mxu0 %v58
  %v98 = vpop.f32.mrf.mxu0
  %v99 = vadd.f32 0.0, %v98
  %100 = vdwg.mxu0
  %v101 = vmul.f32 %v78, 0.5
  %v102 = vmul.f32 %v81, 0.5
  %v103 = vmul.f32 %v84, 0.5
  %v104 = vmul.f32 %v87, 0.5
  %v105 = vmul.f32 %v90, 0.5
  %v106 = vmul.f32 %v93, 0.5
  %v107 = vmul.f32 %v96, 0.5
  %v108 = vmul.f32 %v99, 0.5
  %s109 = scalar_lea.vmem %s2, 64
  %110 = vst [vmem:[%s109] sm:$0xff] %v101
  %111 = vst [vmem:[%s109 + $0x8] sm:$0xff] %v102
  %112 = vst [vmem:[%s109 + $0x10] sm:$0xff] %v103
  %113 = vst [vmem:[%s109 + $0x18] sm:$0xff] %v104
  %114 = vst [vmem:[%s109 + $0x20] sm:$0xff] %v105
  %115 = vst [vmem:[%s109 + $0x28] sm:$0xff] %v106
  %116 = vst [vmem:[%s109 + $0x30] sm:$0xff] %v107
  %117 = vst [vmem:[%s109 + $0x38] sm:$0xff] %v108
  %118 = vmatpush.msra.mxu0 0.0
  %119 = vmatpush.msra.mxu0 0.0
  %120 = vmatpush.msra.mxu0 0.0
  %121 = vmatpush.msra.mxu0 0.0
  %122 = vmatpush.msra.mxu0 0.0
  %123 = vmatpush.msra.mxu0 0.0
  %124 = vmatpush.msra.mxu0 0.0
  %125 = vmatpush.msra.mxu0 0.0
  %126 = vmatpush.msra.mxu0 %v108
  %127 = vmatpush.msra.mxu0 %v107
  %128 = vmatpush.msra.mxu0 %v106
  %129 = vmatpush.msra.mxu0 %v105
  %130 = vmatpush.msra.mxu0 %v104
  %131 = vmatpush.msra.mxu0 %v103
  %132 = vmatpush.msra.mxu0 %v102
  %133 = vmatpush.msra.mxu0 %v101
  %134 = vmatmul.f32.gmra.mxu0 %v37
  %v135 = vpop.f32.mrf.mxu0
  %v136 = vadd.f32 0.0, %v135
  %137 = vmatmul.f32.gmra.mxu0 %v40
  %v138 = vpop.f32.mrf.mxu0
  %v139 = vadd.f32 0.0, %v138
  %140 = vmatmul.f32.gmra.mxu0 %v43
  %v141 = vpop.f32.mrf.mxu0
  %v142 = vadd.f32 0.0, %v141
  %143 = vmatmul.f32.gmra.mxu0 %v46
  %v144 = vpop.f32.mrf.mxu0
  %v145 = vadd.f32 0.0, %v144
  %146 = vmatmul.f32.gmra.mxu0 %v49
  %v147 = vpop.f32.mrf.mxu0
  %v148 = vadd.f32 0.0, %v147
  %149 = vmatmul.f32.gmra.mxu0 %v52
  %v150 = vpop.f32.mrf.mxu0
  %v151 = vadd.f32 0.0, %v150
  %152 = vmatmul.f32.gmra.mxu0 %v55
  %v153 = vpop.f32.mrf.mxu0
  %v154 = vadd.f32 0.0, %v153
  %155 = vmatmul.f32.gmra.mxu0 %v58
  %v156 = vpop.f32.mrf.mxu0
  %v157 = vadd.f32 0.0, %v156
  %158 = vdwg.mxu0
  %v159 = vsub.f32 %v136, %v19
  %v160 = vsub.f32 %v139, %v20
  %v161 = vsub.f32 %v142, %v21
  %v162 = vsub.f32 %v145, %v22
  %v163 = vsub.f32 %v148, %v23
  %v164 = vsub.f32 %v151, %v24
  %v165 = vsub.f32 %v154, %v25
  %v166 = vsub.f32 %v157, %v26
  %s167 = scalar_lea.vmem %s2, 128
  %168 = vst [vmem:[%s167] sm:$0xff] %v159
  %169 = vst [vmem:[%s167 + $0x8] sm:$0xff] %v160
  %170 = vst [vmem:[%s167 + $0x10] sm:$0xff] %v161
  %171 = vst [vmem:[%s167 + $0x18] sm:$0xff] %v162
  %172 = vst [vmem:[%s167 + $0x20] sm:$0xff] %v163
  %173 = vst [vmem:[%s167 + $0x28] sm:$0xff] %v164
  %174 = vst [vmem:[%s167 + $0x30] sm:$0xff] %v165
  %175 = vst [vmem:[%s167 + $0x38] sm:$0xff] %v166
  // Predicated region
  $region10: #{spherical_cheb_bn_forward.3} parent=0 // pred_check
    _
  $region11: #{spherical_cheb_bn_forward.3} parent=0 // pred_check_branch
    %177 = sbr.rel (0) target = $region13
  $region12: #{spherical_cheb_bn_forward.3} parent=0 // pred_region
    _
  $region13: #{spherical_cheb_bn_forward.3} parent=0 // pred_fallthru
    _
  // Predicated region
  $region14: #{spherical_cheb_bn_forward.3} parent=0 // pred_check
    _
  $region15: #{spherical_cheb_bn_forward.3} parent=0 // pred_check_branch
    %179 = sbr.rel (0) target = $region17
  $region16: #{spherical_cheb_bn_forward.3} parent=0 // pred_region
    _
  $region17: #{spherical_cheb_bn_forward.3} parent=0 // pred_fallthru
    _

// kernel: spherical_cheb_bn_forward.5
$region0: #{spherical_cheb_bn_forward.5}
  #allocation0 [shape = 'u32[]', space=smem, size = 0x4, offset = 0x4, fixed_abs, tag = 'smem constant byte address 0x4 - core index']
  #allocation1 [shape = 'u32[72,128]{1,0:T(1,128)}', space=vmem, size = 0x9000, scoped, tag = 'internal scratch']
  %s0 = inlined_call_operand.vmem [shape: f32[128,128], index: 0, kind: input, shape index: {}, may-alias: {0,3}]
  %s1 = inlined_call_operand.vmem [shape: f32[1,128], index: 1, kind: input, shape index: {}]
  %s2 = inlined_call_operand.vmem [shape: f32[1,128], index: 2, kind: input, shape index: {}]
  %s3 = inlined_call_operand.vmem [shape: f32[128,128], index: 3, kind: output, shape index: {}, may-alias: {0,3}]
  %s4 = sld [smem:[#allocation0]]
  $region22: #{spherical_cheb_bn_forward.5} parent=0
    _
  %s6 = ssub.s32 1, %s4
  %s7 = scalar_select 0, %s6, %s4
  // Predicated region
  $region2: #{spherical_cheb_bn_forward.5} parent=0 // pred_check
    _
  $region3: #{spherical_cheb_bn_forward.5} parent=0 // pred_check_branch
    %9 = sbr.rel (0) target = $region5
  $region4: #{spherical_cheb_bn_forward.5} parent=0 // pred_region
    _
  $region5: #{spherical_cheb_bn_forward.5} parent=0 // pred_fallthru
    _
  // Predicated region
  $region6: #{spherical_cheb_bn_forward.5} parent=0 // pred_check
    _
  $region7: #{spherical_cheb_bn_forward.5} parent=0 // pred_check_branch
    %11 = sbr.rel (0) target = $region9
  $region8: #{spherical_cheb_bn_forward.5} parent=0 // pred_region
    _
  $region9: #{spherical_cheb_bn_forward.5} parent=0 // pred_fallthru
    _
  // Predicated region
  $region10: #{spherical_cheb_bn_forward.5} parent=0 // pred_check
    _
  $region11: #{spherical_cheb_bn_forward.5} parent=0 // pred_check_branch
    %13 = sbr.rel (0) target = $region13
  $region12: #{spherical_cheb_bn_forward.5} parent=0 // pred_region
    _
  $region13: #{spherical_cheb_bn_forward.5} parent=0 // pred_fallthru
    _
  %v14 = vld [vmem:[%s0] sm:$0xff]
  %v15 = vld [vmem:[%s0 + $0x8] sm:$0xff]
  %v16 = vld [vmem:[%s0 + $0x10] sm:$0xff]
  %v17 = vld [vmem:[%s0 + $0x18] sm:$0xff]
  %v18 = vld [vmem:[%s0 + $0x20] sm:$0xff]
  %v19 = vld [vmem:[%s0 + $0x28] sm:$0xff]
  %v20 = vld [vmem:[%s0 + $0x30] sm:$0xff]
  %v21 = vld [vmem:[%s0 + $0x38] sm:$0xff]
  %v22 = vld [vmem:[%s0 + $0x40] sm:$0xff]
  %v23 = vld [vmem:[%s0 + $0x48] sm:$0xff]
  %v24 = vld [vmem:[%s0 + $0x50] sm:$0xff]
  %v25 = vld [vmem:[%s0 + $0x58] sm:$0xff]
  %v26 = vld [vmem:[%s0 + $0x60] sm:$0xff]
  %v27 = vld [vmem:[%s0 + $0x68] sm:$0xff]
  %v28 = vld [vmem:[%s0 + $0x70] sm:$0xff]
  %v29 = vld [vmem:[%s0 + $0x78] sm:$0xff]
  %v30 = vld [vmem:[%s1] sm:$0x1]
  %v32 = vperm.slane %v30, 0
  %v34 = vmul.f32 %v14, %v32
  %v35 = vmul.f32 %v15, %v32
  %v36 = vmul.f32 %v16, %v32
  %v37 = vmul.f32 %v17, %v32
  %v38 = vmul.f32 %v18, %v32
  %v39 = vmul.f32 %v19, %v32
  %v40 = vmul.f32 %v20, %v32
  %v41 = vmul.f32 %v21, %v32
  %v42 = vmul.f32 %v22, %v32
  %v43 = vmul.f32 %v23, %v32
  %v44 = vmul.f32 %v24, %v32
  %v45 = vmul.f32 %v25, %v32
  %v46 = vmul.f32 %v26, %v32
  %v47 = vmul.f32 %v27, %v32
  %v48 = vmul.f32 %v28, %v32
  %v49 = vmul.f32 %v29, %v32
  %v50 = vld [vmem:[%s2] sm:$0x1]
  %v52 = vperm.slane %v50, 0
  %v54 = vadd.f32 %v34, %v52
  %v55 = vadd.f32 %v35, %v52
  %v56 = vadd.f32 %v36, %v52
  %v57 = vadd.f32 %v37, %v52
  %v58 = vadd.f32 %v38, %v52
  %v59 = vadd.f32 %v39, %v52
  %v60 = vadd.f32 %v40, %v52
  %v61 = vadd.f32 %v41, %v52
  %v62 = vadd.f32 %v42, %v52
  %v63 = vadd.f32 %v43, %v52
  %v64 = vadd.f32 %v44, %v52
  %v65 = vadd.f32 %v45, %v52
  %v66 = vadd.f32 %v46, %v52
  %v67 = vadd.f32 %v47, %v52
  %v68 = vadd.f32 %v48, %v52
  %v69 = vadd.f32 %v49, %v52
  %v70 = vmax.f32 %v54, 0.0
  %v71 = vmax.f32 %v55, 0.0
  %v72 = vmax.f32 %v56, 0.0
  %v73 = vmax.f32 %v57, 0.0
  %v74 = vmax.f32 %v58, 0.0
  %v75 = vmax.f32 %v59, 0.0
  %v76 = vmax.f32 %v60, 0.0
  %v77 = vmax.f32 %v61, 0.0
  %v78 = vmax.f32 %v62, 0.0
  %v79 = vmax.f32 %v63, 0.0
  %v80 = vmax.f32 %v64, 0.0
  %v81 = vmax.f32 %v65, 0.0
  %v82 = vmax.f32 %v66, 0.0
  %v83 = vmax.f32 %v67, 0.0
  %v84 = vmax.f32 %v68, 0.0
  %v85 = vmax.f32 %v69, 0.0
  %86 = vst [vmem:[%s3] sm:$0xff] %v70
  %87 = vst [vmem:[%s3 + $0x8] sm:$0xff] %v71
  %88 = vst [vmem:[%s3 + $0x10] sm:$0xff] %v72
  %89 = vst [vmem:[%s3 + $0x18] sm:$0xff] %v73
  %90 = vst [vmem:[%s3 + $0x20] sm:$0xff] %v74
  %91 = vst [vmem:[%s3 + $0x28] sm:$0xff] %v75
  %92 = vst [vmem:[%s3 + $0x30] sm:$0xff] %v76
  %93 = vst [vmem:[%s3 + $0x38] sm:$0xff] %v77
  %94 = vst [vmem:[%s3 + $0x40] sm:$0xff] %v78
  %95 = vst [vmem:[%s3 + $0x48] sm:$0xff] %v79
  %96 = vst [vmem:[%s3 + $0x50] sm:$0xff] %v80
  %97 = vst [vmem:[%s3 + $0x58] sm:$0xff] %v81
  %98 = vst [vmem:[%s3 + $0x60] sm:$0xff] %v82
  %99 = vst [vmem:[%s3 + $0x68] sm:$0xff] %v83
  %100 = vst [vmem:[%s3 + $0x70] sm:$0xff] %v84
  %101 = vst [vmem:[%s3 + $0x78] sm:$0xff] %v85
  // Predicated region
  $region14: #{spherical_cheb_bn_forward.5} parent=0 // pred_check
    _
  $region15: #{spherical_cheb_bn_forward.5} parent=0 // pred_check_branch
    %103 = sbr.rel (0) target = $region17
  $region16: #{spherical_cheb_bn_forward.5} parent=0 // pred_region
    _
  $region17: #{spherical_cheb_bn_forward.5} parent=0 // pred_fallthru
    _
  // Predicated region
  $region18: #{spherical_cheb_bn_forward.5} parent=0 // pred_check
    _
  $region19: #{spherical_cheb_bn_forward.5} parent=0 // pred_check_branch
    %105 = sbr.rel (0) target = $region21
  $region20: #{spherical_cheb_bn_forward.5} parent=0 // pred_region
    _
  $region21: #{spherical_cheb_bn_forward.5} parent=0 // pred_fallthru
    _

// kernel: spherical_cheb_bn_forward.4
$region0: #{spherical_cheb_bn_forward.4}
  #allocation0 [shape = 'u32[]', space=smem, size = 0x4, offset = 0x4, fixed_abs, tag = 'smem constant byte address 0x4 - core index']
  #allocation1 [shape = 'u32[72,128]{1,0:T(1,128)}', space=vmem, size = 0x9000, scoped, tag = 'internal scratch']
  %s0 = inlined_call_operand.vmem [shape: f32[128,12], index: 0, kind: input, shape index: {}]
  %s1 = inlined_call_operand.vmem [shape: f32[12,128], index: 1, kind: input, shape index: {}]
  %s2 = inlined_call_operand.vmem [shape: f32[1,128], index: 2, kind: input, shape index: {}]
  %s3 = inlined_call_operand.vmem [shape: f32[128,128], index: 3, kind: output, shape index: {0}]
  %s4 = inlined_call_operand.vmem [shape: f32[1,2,128], index: 4, kind: output, shape index: {1}]
  %5 = xla_tuple %s3, %s4
  %s6 = sld [smem:[#allocation0]]
  $region30: #{spherical_cheb_bn_forward.4} parent=0
    _
  %s8 = ssub.s32 1, %s6
  %s9 = scalar_select 0, %s8, %s6
  // Predicated region
  $region2: #{spherical_cheb_bn_forward.4} parent=0 // pred_check
    _
  $region3: #{spherical_cheb_bn_forward.4} parent=0 // pred_check_branch
    %11 = sbr.rel (0) target = $region5
  $region4: #{spherical_cheb_bn_forward.4} parent=0 // pred_region
    _
  $region5: #{spherical_cheb_bn_forward.4} parent=0 // pred_fallthru
    _
  // Predicated region
  $region6: #{spherical_cheb_bn_forward.4} parent=0 // pred_check
    _
  $region7: #{spherical_cheb_bn_forward.4} parent=0 // pred_check_branch
    %13 = sbr.rel (0) target = $region9
  $region8: #{spherical_cheb_bn_forward.4} parent=0 // pred_region
    _
  $region9: #{spherical_cheb_bn_forward.4} parent=0 // pred_fallthru
    _
  // Predicated region
  $region10: #{spherical_cheb_bn_forward.4} parent=0 // pred_check
    _
  $region11: #{spherical_cheb_bn_forward.4} parent=0 // pred_check_branch
    %15 = sbr.rel (0) target = $region13
  $region12: #{spherical_cheb_bn_forward.4} parent=0 // pred_region
    _
  $region13: #{spherical_cheb_bn_forward.4} parent=0 // pred_fallthru
    _
  %v16 = vld [vmem:[%s0] sm:$0xff]
  %v17 = vld [vmem:[%s0 + $0x8] sm:$0xff]
  %v18 = vld [vmem:[%s0 + $0x10] sm:$0xff]
  %v19 = vld [vmem:[%s0 + $0x18] sm:$0xff]
  %v20 = vld [vmem:[%s0 + $0x20] sm:$0xff]
  %v21 = vld [vmem:[%s0 + $0x28] sm:$0xff]
  %v22 = vld [vmem:[%s0 + $0x30] sm:$0xff]
  %v23 = vld [vmem:[%s0 + $0x38] sm:$0xff]
  %v24 = vld [vmem:[%s0 + $0x40] sm:$0xff]
  %v25 = vld [vmem:[%s0 + $0x48] sm:$0xff]
  %v26 = vld [vmem:[%s0 + $0x50] sm:$0xff]
  %v27 = vld [vmem:[%s0 + $0x58] sm:$0xff]
  %v28 = vld [vmem:[%s0 + $0x60] sm:$0xff]
  %v29 = vld [vmem:[%s0 + $0x68] sm:$0xff]
  %v30 = vld [vmem:[%s0 + $0x70] sm:$0xff]
  %v31 = vld [vmem:[%s0 + $0x78] sm:$0xff]
  %v32 = vld [vmem:[%s1] sm:$0xff]
  %v33 = vld [vmem:[%s1 + $0x8] sm:$0xf]
  %v34 = vld [vmem:[%s2] sm:$0x1]
  %v36 = vperm.slane %v34, 0
  %vm38 = vcmask 97280
  %v40 = vsel %vm38, %v16, 0
  %v43 = vsel %vm38, %v17, 0
  %v46 = vsel %vm38, %v18, 0
  %v49 = vsel %vm38, %v19, 0
  %v52 = vsel %vm38, %v20, 0
  %v55 = vsel %vm38, %v21, 0
  %v58 = vsel %vm38, %v22, 0
  %v61 = vsel %vm38, %v23, 0
  %v64 = vsel %vm38, %v24, 0
  %v67 = vsel %vm38, %v25, 0
  %v70 = vsel %vm38, %v26, 0
  %v73 = vsel %vm38, %v27, 0
  %v76 = vsel %vm38, %v28, 0
  %v79 = vsel %vm38, %v29, 0
  %v82 = vsel %vm38, %v30, 0
  %v85 = vsel %vm38, %v31, 0
  %vm87 = vcmask 1043456
  %v89 = vsel %vm87, %v33, 0
  %91 = vmatpush.msra.mxu0 0.0
  %92 = vmatpush.msra.mxu0 0.0
  %93 = vmatpush.msra.mxu0 0.0
  %94 = vmatpush.msra.mxu0 0.0
  %95 = vmatpush.msra.mxu0 0.0
  %96 = vmatpush.msra.mxu0 0.0
  %97 = vmatpush.msra.mxu0 0.0
  %98 = vmatpush.msra.mxu0 0.0
  %99 = vmatpush.msra.mxu0 0.0
  %100 = vmatpush.msra.mxu0 0.0
  %101 = vmatpush.msra.mxu0 0.0
  %102 = vmatpush.msra.mxu0 0.0
  %103 = vmatpush.msra.mxu0 0.0
  %104 = vmatpush.msra.mxu0 0.0
  %105 = vmatpush.msra.mxu0 %v89
  %106 = vmatpush.msra.mxu0 %v32
  %107 = vmatmul.f32.gmra.mxu0 %v40
  %v108 = vpop.f32.mrf.mxu0
  %v109 = vadd.f32 %v36, %v108
  %110 = vmatmul.f32.gmra.mxu0 %v43
  %v111 = vpop.f32.mrf.mxu0
  %v112 = vadd.f32 %v36, %v111
  %113 = vmatmul.f32.gmra.mxu0 %v46
  %v114 = vpop.f32.mrf.mxu0
  %v115 = vadd.f32 %v36, %v114
  %116 = vmatmul.f32.gmra.mxu0 %v49
  %v117 = vpop.f32.mrf.mxu0
  %v118 = vadd.f32 %v36, %v117
  %119 = vmatmul.f32.gmra.mxu0 %v52
  %v120 = vpop.f32.mrf.mxu0
  %v121 = vadd.f32 %v36, %v120
  %122 = vmatmul.f32.gmra.mxu0 %v55
  %v123 = vpop.f32.mrf.mxu0
  %v124 = vadd.f32 %v36, %v123
  %125 = vmatmul.f32.gmra.mxu0 %v58
  %v126 = vpop.f32.mrf.mxu0
  %v127 = vadd.f32 %v36, %v126
  %128 = vmatmul.f32.gmra.mxu0 %v61
  %v129 = vpop.f32.mrf.mxu0
  %v130 = vadd.f32 %v36, %v129
  %131 = vmatmul.f32.gmra.mxu0 %v64
  %v132 = vpop.f32.mrf.mxu0
  %v133 = vadd.f32 %v36, %v132
  %134 = vmatmul.f32.gmra.mxu0 %v67
  %v135 = vpop.f32.mrf.mxu0
  %v136 = vadd.f32 %v36, %v135
  %137 = vmatmul.f32.gmra.mxu0 %v70
  %v138 = vpop.f32.mrf.mxu0
  %v139 = vadd.f32 %v36, %v138
  %140 = vmatmul.f32.gmra.mxu0 %v73
  %v141 = vpop.f32.mrf.mxu0
  %v142 = vadd.f32 %v36, %v141
  %143 = vmatmul.f32.gmra.mxu0 %v76
  %v144 = vpop.f32.mrf.mxu0
  %v145 = vadd.f32 %v36, %v144
  %146 = vmatmul.f32.gmra.mxu0 %v79
  %v147 = vpop.f32.mrf.mxu0
  %v148 = vadd.f32 %v36, %v147
  %149 = vmatmul.f32.gmra.mxu0 %v82
  %v150 = vpop.f32.mrf.mxu0
  %v151 = vadd.f32 %v36, %v150
  %152 = vmatmul.f32.gmra.mxu0 %v85
  %v153 = vpop.f32.mrf.mxu0
  %v154 = vadd.f32 %v36, %v153
  %155 = vdwg.mxu0
  %156 = vst [vmem:[%s3] sm:$0xff] %v109
  %157 = vst [vmem:[%s3 + $0x8] sm:$0xff] %v112
  %158 = vst [vmem:[%s3 + $0x10] sm:$0xff] %v115
  %159 = vst [vmem:[%s3 + $0x18] sm:$0xff] %v118
  %160 = vst [vmem:[%s3 + $0x20] sm:$0xff] %v121
  %161 = vst [vmem:[%s3 + $0x28] sm:$0xff] %v124
  %162 = vst [vmem:[%s3 + $0x30] sm:$0xff] %v127
  %163 = vst [vmem:[%s3 + $0x38] sm:$0xff] %v130
  %164 = vst [vmem:[%s3 + $0x40] sm:$0xff] %v133
  %165 = vst [vmem:[%s3 + $0x48] sm:$0xff] %v136
  %166 = vst [vmem:[%s3 + $0x50] sm:$0xff] %v139
  %167 = vst [vmem:[%s3 + $0x58] sm:$0xff] %v142
  %168 = vst [vmem:[%s3 + $0x60] sm:$0xff] %v145
  %169 = vst [vmem:[%s3 + $0x68] sm:$0xff] %v148
  %170 = vst [vmem:[%s3 + $0x70] sm:$0xff] %v151
  %171 = vst [vmem:[%s3 + $0x78] sm:$0xff] %v154
  %v172 = vadd.f32 %v109, %v112
  %v173 = vadd.f32 %v172, %v115
  %v174 = vadd.f32 %v173, %v118
  %v175 = vadd.f32 %v174, %v121
  %v176 = vadd.f32 %v175, %v124
  %v177 = vadd.f32 %v176, %v127
  %v178 = vadd.f32 %v177, %v130
  %v179 = vadd.f32 %v178, %v133
  %v180 = vadd.f32 %v179, %v136
  %v181 = vadd.f32 %v180, %v139
  %v182 = vadd.f32 %v181, %v142
  %v183 = vadd.f32 %v182, %v145
  %v184 = vadd.f32 %v183, %v148
  %v185 = vadd.f32 %v184, %v151
  %v186 = vadd.f32 %v185, %v154
  %v187 = vrot.slane %v186, 4
  %v188 = vadd.f32 %v186, %v187
  %v189 = vrot.slane %v188, 2
  %v190 = vadd.f32 %v188, %v189
  %v191 = vrot.slane %v190, 1
  %v192 = vadd.f32 %v190, %v191
  %v193 = vmul.f32 %v109, %v109
  %v194 = vmul.f32 %v112, %v112
  %v195 = vmul.f32 %v115, %v115
  %v196 = vmul.f32 %v118, %v118
  %v197 = vmul.f32 %v121, %v121
  %v198 = vmul.f32 %v124, %v124
  %v199 = vmul.f32 %v127, %v127
  %v200 = vmul.f32 %v130, %v130
  %v201 = vmul.f32 %v133, %v133
  %v202 = vmul.f32 %v136, %v136
  %v203 = vmul.f32 %v139, %v139
  %v204 = vmul.f32 %v142, %v142
  %v205 = vmul.f32 %v145, %v145
  %v206 = vmul.f32 %v148, %v148
  %v207 = vmul.f32 %v151, %v151
  %v208 = vmul.f32 %v154, %v154
  %v209 = vadd.f32 %v193, %v194
  %v210 = vadd.f32 %v209, %v195
  %v211 = vadd.f32 %v210, %v196
  %v212 = vadd.f32 %v211, %v197
  %v213 = vadd.f32 %v212, %v198
  %v214 = vadd.f32 %v213, %v199
  %v215 = vadd.f32 %v214, %v200
  %v216 = vadd.f32 %v215, %v201
  %v217 = vadd.f32 %v216, %v202
  %v218 = vadd.f32 %v217, %v203
  %v219 = vadd.f32 %v218, %v204
  %v220 = vadd.f32 %v219, %v205
  %v221 = vadd.f32 %v220, %v206
  %v222 = vadd.f32 %v221, %v207
  %v223 = vadd.f32 %v222, %v208
  %v224 = vrot.slane %v223, 4
  %v225 = vadd.f32 %v223, %v224
  %v226 = vrot.slane %v225, 2
  %v227 = vadd.f32 %v225, %v226
  %v228 = vrot.slane %v227, 1
  %v229 = vadd.f32 %v227, %v228
  %vm230 = vcmask 1040384
  %v231 = vsel %vm230, %v192, %v229
  %232 = vst [vmem:[%s4] sm:$0x3] %v231
  // Predicated region
  $region14: #{spherical_cheb_bn_forward.4} parent=0 // pred_check
    _
  $region15: #{spherical_cheb_bn_forward.4} parent=0 // pred_check_branch
    %234 = sbr.rel (0) target = $region17
  $region16: #{spherical_cheb_bn_forward.4} parent=0 // pred_region
    _
  $region17: #{spherical_cheb_bn_forward.4} parent=0 // pred_fallthru
    _
  // Predicated region
  $region18: #{spherical_cheb_bn_forward.4} parent=0 // pred_check
    _
  $region19: #{spherical_cheb_bn_forward.4} parent=0 // pred_check_branch
    %236 = sbr.rel (0) target = $region21
  $region20: #{spherical_cheb_bn_forward.4} parent=0 // pred_region
    _
  $region21: #{spherical_cheb_bn_forward.4} parent=0 // pred_fallthru
    _
  // Predicated region
  $region22: #{spherical_cheb_bn_forward.4} parent=0 // pred_check
    _
  $region23: #{spherical_cheb_bn_forward.4} parent=0 // pred_check_branch
    %238 = sbr.rel (0) target = $region25
  $region24: #{spherical_cheb_bn_forward.4} parent=0 // pred_region
    _
  $region25: #{spherical_cheb_bn_forward.4} parent=0 // pred_fallthru
    _
  // Predicated region
  $region26: #{spherical_cheb_bn_forward.4} parent=0 // pred_check
    _
  $region27: #{spherical_cheb_bn_forward.4} parent=0 // pred_check_branch
    %240 = sbr.rel (0) target = $region29
  $region28: #{spherical_cheb_bn_forward.4} parent=0 // pred_region
    _
  $region29: #{spherical_cheb_bn_forward.4} parent=0 // pred_fallthru
    _

</llo_original>
